<compile_context>
chip_gen: v7x
topology: tpu7x:2x2x1
jax: 0.10.0
libtpu: 0.0.40
codegen_flags: <defaults>
</compile_context>

<pallas_src>
import functools

import jax
import jax.numpy as jnp
from jax.experimental import pallas as pl
from jax.experimental.pallas import tpu as pltpu


def _round_up(x, m):
    return (x + m - 1) // m * m


def _choose_instance_batch(num_instances, n_pad, target_rows=128):
    """Instances fused per grid step so the matmul M dim ~ MXU rows (128)."""
    ib = max(1, target_rows // n_pad)
    ib = min(ib, num_instances)
    # Keep >=2 grid steps when possible: v7x has 2 TensorCores and >=2 steps
    # also lets the BlockSpec pipeline overlap input DMA with compute.
    while ib > 1 and -(-num_instances // ib) < 2:
        ib //= 2
    return ib


def surrogate_encoder_kernel(seq_ref, ew_ref, adj_ref, b_ref, batch_ref,
                             out_ref, *, ib, n_pad, num_graphs):
    """One grid step = IB independent graph-batch instances (M = IB * Np).

    seq_ref   : [1, M, T]   int32   token ids per node (pad token -> no match)
    ew_ref    : [Vp, Hp]    bf16    fused emb @ W (zero-padded)
    adj_ref   : [1, M, M]   bf16    block-diagonal adjacency (+ self loops)
    b_ref     : [1, Hp]     f32     GCN bias (zero-padded)
    batch_ref : [1, M, 1]   int32   graph id per node (-1 for padded nodes)
    out_ref   : [IB, Gp, Hp] f32    pooled per-(instance, graph) embedding
    """
    seq = seq_ref[0]            # [M, T]  int32
    adj = adj_ref[0]            # [M, M]  bf16  block-diagonal over IB instances
    node_graph = batch_ref[0]   # [M, 1]  int32
    ew = ew_ref[...]            # [Vp, Hp] bf16
    b = b_ref[...]              # [1, Hp] f32

    m, t_len = seq.shape
    v_pad, h_pad = ew.shape

    # ---- CustomSTEncoder: embedding lookup + sum over the token axis -------
    # counts[n, v] = #{t : seq[n, t] == v}; accumulated without ever holding an
    # [M, T, V] intermediate.  counts <= T and adjacency in {0,1,2} are exact
    # integers in bf16, so the bf16 MXU path loses nothing on them.
    vocab_iota = jax.lax.broadcasted_iota(jnp.int32, (m, v_pad), 1)
    counts = jnp.zeros((m, v_pad), jnp.float32)
    for t in range(t_len):      # short static loop; only [M, Vp] live
        counts = counts + (seq[:, t:t + 1] == vocab_iota).astype(jnp.float32)

    # emb @ W folded offline into EW -> a single MXU matmul here.
    xw = jnp.dot(counts.astype(jnp.bfloat16), ew,
                 preferred_element_type=jnp.float32)            # [M, Hp] f32

    # ---- GCN layer: relu((A + I) X W + b) -----------------------------------
    # One dense block-diagonal push aggregates all IB instances at once.
    h = jnp.dot(adj, xw.astype(jnp.bfloat16),
                preferred_element_type=jnp.float32) + b
    h = jnp.maximum(h, 0.0)                                      # [M, Hp] f32

    # ---- global_max_pool: per-(instance, graph) masked max ------------------
    # Fill value 0.0 is safe because h >= 0 post-ReLU (empty graph slots pool
    # to 0 instead of -inf; padded graph rows stay 0 and are sliced off).
    h_r = h.reshape(ib, n_pad, h_pad)                            # tile-aligned
    gid = node_graph.reshape(ib, n_pad, 1)
    out_ref[...] = jnp.zeros_like(out_ref)                       # pad rows -> 0
    for g in range(num_graphs):                                  # real graphs only
        mask = gid == g                                          # [IB, Np, 1]
        out_ref[:, g, :] = jnp.max(jnp.where(mask, h_r, 0.0), axis=1)


@functools.partial(jax.jit, static_argnames=("num_graphs",))
def surrogate_encoder_forward(seq, emb, adj, w, b, batch, *, num_graphs):
    """seq [B,N,T] int, emb [V,D], adj [B,N,N], w [D,H], b [H], batch [B,N]."""
    B, N, T = seq.shape
    V, D = emb.shape
    H = w.shape[1]
    G = num_graphs

    n_pad = _round_up(N, 8)
    v_pad = _round_up(V, 128)
    h_pad = _round_up(H, 128)
    g_pad = _round_up(G, 8)

    ib = _choose_instance_batch(B, n_pad)
    b_pad = _round_up(B, ib)
    steps = b_pad // ib
    m_pad = ib * n_pad

    # ---- Offline weight fusion: EW = emb @ W (f32), one bf16 cast ----------
    ew = jnp.matmul(emb.astype(jnp.float32), w.astype(jnp.float32))  # [V, H]
    ew_p = jnp.zeros((v_pad, h_pad), jnp.float32).at[:V, :H].set(
        ew).astype(jnp.bfloat16)
    b_p = jnp.zeros((1, h_pad), jnp.float32).at[0, :H].set(b)

    # ---- Padding + instance batching (pure wrapper plumbing) ---------------
    # Padded tokens get id V: the compare-based counts never match it when
    # V == v_pad, and when V < v_pad it hits a zero row of EW.  Padded nodes /
    # padded instances get graph id -1 so they never enter any graph's max.
    seq_p = jnp.full((b_pad, n_pad, T), V, jnp.int32).at[:B, :N, :].set(
        seq.astype(jnp.int32)).reshape(steps, m_pad, T)
    batch_p = jnp.full((b_pad, n_pad), -1, jnp.int32).at[:B, :N].set(
        batch.astype(jnp.int32)).reshape(steps, m_pad)[..., None]

    # Block-diagonal adjacency: the IB instances of a grid step share a single
    # [m_pad, m_pad] matmul instead of IB tiny K=n_pad matmuls.
    adj_p = jnp.zeros((b_pad, n_pad, n_pad), jnp.float32).at[:B, :N, :N].set(adj)
    adj_p = adj_p.reshape(steps, ib, n_pad, n_pad)
    adj_bd = jnp.einsum("sbij,bc->sbicj", adj_p, jnp.eye(ib, dtype=jnp.float32))
    adj_bd = adj_bd.reshape(steps, m_pad, m_pad).astype(jnp.bfloat16)

    kernel = functools.partial(surrogate_encoder_kernel,
                               ib=ib, n_pad=n_pad, num_graphs=G)

    out = pl.pallas_call(
        kernel,
        out_shape=jax.ShapeDtypeStruct((b_pad, g_pad, h_pad), jnp.float32),
        grid=(steps,),
        in_specs=[
            pl.BlockSpec((1, m_pad, T), lambda i: (i, 0, 0)),
            pl.BlockSpec((v_pad, h_pad), lambda i: (0, 0)),
            pl.BlockSpec((1, m_pad, m_pad), lambda i: (i, 0, 0)),
            pl.BlockSpec((1, h_pad), lambda i: (0, 0)),
            pl.BlockSpec((1, m_pad, 1), lambda i: (i, 0, 0)),
        ],
        out_specs=pl.BlockSpec((ib, g_pad, h_pad), lambda i: (i, 0, 0)),
        compiler_params=pltpu.CompilerParams(
            # instance axis is independent -> shardable across v7x's 2 TCs
            dimension_semantics=("parallel",),
            # explicit scoped-VMEM budget (tiny footprint here).  v6e may raise
            # this (128 MiB physical); on v7x (64 MiB) large vocab tables should
            # take the tiled-vocab path instead (see TODO at top).
            vmem_limit_bytes=32 * 1024 * 1024,
        ),
    )(seq_p, ew_p, adj_bd, b_p, batch_p)
    return out[:B, :G, :H]


def reference_forward(seq, emb, adj, w, b, batch, num_graphs):
    """Pure-f32 JAX reference (no bf16 quantization)."""
    x = jnp.take(emb, seq, axis=0).sum(axis=2)                         # [B,N,D]
    h = jnp.maximum(jnp.matmul(adj, x) @ w + b[None, None, :], 0.0)    # [B,N,H]
    mask = batch[:, None, :] == jnp.arange(num_graphs)[None, :, None]  # [B,G,N]
    hm = jnp.where(mask[..., None], h[:, None, :, :], -jnp.inf)        # [B,G,N,H]
    return jnp.max(hm, axis=2)                                         # [B,G,H]


if __name__ == "__main__":
    # Small shapes consistent with the module; B independent graph-batch
    # instances are fused IB-per-grid-step inside one pallas_call.
    B = 8    # graph-batch instances
    N = 16   # nodes per batched graph
    T = 8    # max parts (tokens per statement / node)
    V = 32   # vocabulary size
    D = 32   # embed_size == config.rnn.hidden_size
    H = 32   # config.hidden_size
    G = 2    # graphs per instance
    # config.n_hidden_layers = 2 -> forward applies exactly one relu(GCN).

    key = jax.random.PRNGKey(0)
    k_seq, k_emb, k_w, k_b = jax.random.split(key, 4)

    seq = jax.random.randint(k_seq, (B, N, T), 0, V, dtype=jnp.int32)

    emb_bound = (6.0 / (V + D)) ** 0.5
    emb = jax.random.uniform(k_emb, (V, D), jnp.float32, -emb_bound, emb_bound)
    w_bound = (6.0 / (D + H)) ** 0.5
    w = jax.random.uniform(k_w, (D, H), jnp.float32, -w_bound, w_bound)
    b = jax.random.uniform(k_b, (H,), jnp.float32, -0.1, 0.1)

    # Graph structure (same for every instance): nodes 0..9 -> graph 0,
    # nodes 10..15 -> graph 1, a ring of edges inside each graph.
    batch1 = jnp.array([0] * 10 + [1] * 6, dtype=jnp.int32)
    g0 = jnp.arange(10)
    g1 = jnp.arange(10, 16)
    src = jnp.concatenate([g0, g1])
    dst = jnp.concatenate([jnp.roll(g0, -1), jnp.roll(g1, -1)])
    edge_index = jnp.stack([src, dst]).astype(jnp.int32)    # [2, E]

    # Glue: densify edge_index into [N, N] adjacency (rows=dst) + self loops.
    adj1 = jnp.zeros((N, N), jnp.float32)
    adj1 = adj1.at[edge_index[1], edge_index[0]].add(1.0)
    adj1 = adj1 + jnp.eye(N, dtype=jnp.float32)

    adj = jnp.broadcast_to(adj1, (B, N, N))
    batch = jnp.broadcast_to(batch1, (B, N))

    out = surrogate_encoder_forward(seq, emb, adj, w, b, batch, num_graphs=G)
    out = jax.block_until_ready(out)

    ref = reference_forward(seq, emb, adj, w, b, batch, G)
    assert out.shape == (B, G, H), out.shape
    # Tolerance reflects the deliberate bf16 quantization of MXU operands
    # (emb@W fused offline in f32, then cast); accumulation stays f32.
    assert jnp.allclose(out, ref, rtol=3e-2, atol=3e-2), (
        float(jnp.max(jnp.abs(out - ref))))

    print("KERNEL_OK")
</pallas_src>

<mosaic_0001>
module attributes {stable_mosaic.version = 11 : i64} {
  func.func @surrogate_encoder_kernel(%arg0: i32, %arg1: memref<1x64x8xi32, #tpu.memory_space<vmem>>, %arg2: memref<128x128xbf16, #tpu.memory_space<vmem>>, %arg3: memref<1x64x64xbf16, #tpu.memory_space<vmem>>, %arg4: memref<1x128xf32, #tpu.memory_space<vmem>>, %arg5: memref<1x64x1xi32, #tpu.memory_space<vmem>>, %arg6: memref<4x8x128xf32, #tpu.memory_space<vmem>>) attributes {dimension_semantics = [#tpu.dimension_semantics<parallel>], iteration_bounds = array<i64: 2>, scalar_prefetch = 0 : i64, scratch_operands = 0 : i64, tpu.core_type = #tpu.core_type<tc>, window_params = [{transform_indices = @transform_0, window_bounds = array<i64: 1, 64, 8>}, {pipeline_mode = #tpu.pipeline_mode<synchronous>, transform_indices = @transform_1, window_bounds = array<i64: 128, 128>}, {transform_indices = @transform_2, window_bounds = array<i64: 1, 64, 64>}, {pipeline_mode = #tpu.pipeline_mode<synchronous>, transform_indices = @transform_3, window_bounds = array<i64: 1, 128>}, {transform_indices = @transform_4, window_bounds = array<i64: 1, 64, 1>}, {transform_indices = @transform_5, window_bounds = array<i64: 4, 8, 128>}]} {
    %c0 = arith.constant 0 : index
    %c0_0 = arith.constant 0 : index
    %c0_1 = arith.constant 0 : index
    %0 = vector.load %arg1[%c0, %c0_0, %c0_1] : memref<1x64x8xi32, #tpu.memory_space<vmem>>, vector<1x64x8xi32>
    %1 = vector.shape_cast %0 : vector<1x64x8xi32> to vector<64x8xi32>
    %c0_2 = arith.constant 0 : index
    %c0_3 = arith.constant 0 : index
    %c0_4 = arith.constant 0 : index
    %2 = vector.load %arg3[%c0_2, %c0_3, %c0_4] : memref<1x64x64xbf16, #tpu.memory_space<vmem>>, vector<1x64x64xbf16>
    %3 = vector.shape_cast %2 : vector<1x64x64xbf16> to vector<64x64xbf16>
    %c0_5 = arith.constant 0 : index
    %c0_6 = arith.constant 0 : index
    %c0_7 = arith.constant 0 : index
    %4 = vector.load %arg5[%c0_5, %c0_6, %c0_7] : memref<1x64x1xi32, #tpu.memory_space<vmem>>, vector<1x64x1xi32>
    %5 = vector.shape_cast %4 : vector<1x64x1xi32> to vector<64x1xi32>
    %c0_8 = arith.constant 0 : index
    %c0_9 = arith.constant 0 : index
    %6 = vector.load %arg2[%c0_8, %c0_9] : memref<128x128xbf16, #tpu.memory_space<vmem>>, vector<128x128xbf16>
    %c0_10 = arith.constant 0 : index
    %c0_11 = arith.constant 0 : index
    %7 = vector.load %arg4[%c0_10, %c0_11] : memref<1x128xf32, #tpu.memory_space<vmem>>, vector<1x128xf32>
    %8 = tpu.iota {dimensions = array<i32: 1>} : vector<64x128xi32>
    %cst = arith.constant 0.000000e+00 : f32
    %9 = vector.broadcast %cst : f32 to vector<64x128xf32>
    %10 = vector.extract_strided_slice %1 {offsets = [0, 0], sizes = [64, 1], strides = [1, 1]} : vector<64x8xi32> to vector<64x1xi32>
    %11 = vector.broadcast %10 : vector<64x1xi32> to vector<64x128xi32>
    %12 = arith.cmpi eq, %11, %8 : vector<64x128xi32>
    %13 = arith.extui %12 : vector<64x128xi1> to vector<64x128xi32>
    %14 = arith.sitofp %13 : vector<64x128xi32> to vector<64x128xf32>
    %15 = arith.addf %9, %14 : vector<64x128xf32>
    %16 = vector.extract_strided_slice %1 {offsets = [0, 1], sizes = [64, 1], strides = [1, 1]} : vector<64x8xi32> to vector<64x1xi32>
    %17 = vector.broadcast %16 : vector<64x1xi32> to vector<64x128xi32>
    %18 = arith.cmpi eq, %17, %8 : vector<64x128xi32>
    %19 = arith.extui %18 : vector<64x128xi1> to vector<64x128xi32>
    %20 = arith.sitofp %19 : vector<64x128xi32> to vector<64x128xf32>
    %21 = arith.addf %15, %20 : vector<64x128xf32>
    %22 = vector.extract_strided_slice %1 {offsets = [0, 2], sizes = [64, 1], strides = [1, 1]} : vector<64x8xi32> to vector<64x1xi32>
    %23 = vector.broadcast %22 : vector<64x1xi32> to vector<64x128xi32>
    %24 = arith.cmpi eq, %23, %8 : vector<64x128xi32>
    %25 = arith.extui %24 : vector<64x128xi1> to vector<64x128xi32>
    %26 = arith.sitofp %25 : vector<64x128xi32> to vector<64x128xf32>
    %27 = arith.addf %21, %26 : vector<64x128xf32>
    %28 = vector.extract_strided_slice %1 {offsets = [0, 3], sizes = [64, 1], strides = [1, 1]} : vector<64x8xi32> to vector<64x1xi32>
    %29 = vector.broadcast %28 : vector<64x1xi32> to vector<64x128xi32>
    %30 = arith.cmpi eq, %29, %8 : vector<64x128xi32>
    %31 = arith.extui %30 : vector<64x128xi1> to vector<64x128xi32>
    %32 = arith.sitofp %31 : vector<64x128xi32> to vector<64x128xf32>
    %33 = arith.addf %27, %32 : vector<64x128xf32>
    %34 = vector.extract_strided_slice %1 {offsets = [0, 4], sizes = [64, 1], strides = [1, 1]} : vector<64x8xi32> to vector<64x1xi32>
    %35 = vector.broadcast %34 : vector<64x1xi32> to vector<64x128xi32>
    %36 = arith.cmpi eq, %35, %8 : vector<64x128xi32>
    %37 = arith.extui %36 : vector<64x128xi1> to vector<64x128xi32>
    %38 = arith.sitofp %37 : vector<64x128xi32> to vector<64x128xf32>
    %39 = arith.addf %33, %38 : vector<64x128xf32>
    %40 = vector.extract_strided_slice %1 {offsets = [0, 5], sizes = [64, 1], strides = [1, 1]} : vector<64x8xi32> to vector<64x1xi32>
    %41 = vector.broadcast %40 : vector<64x1xi32> to vector<64x128xi32>
    %42 = arith.cmpi eq, %41, %8 : vector<64x128xi32>
    %43 = arith.extui %42 : vector<64x128xi1> to vector<64x128xi32>
    %44 = arith.sitofp %43 : vector<64x128xi32> to vector<64x128xf32>
    %45 = arith.addf %39, %44 : vector<64x128xf32>
    %46 = vector.extract_strided_slice %1 {offsets = [0, 6], sizes = [64, 1], strides = [1, 1]} : vector<64x8xi32> to vector<64x1xi32>
    %47 = vector.broadcast %46 : vector<64x1xi32> to vector<64x128xi32>
    %48 = arith.cmpi eq, %47, %8 : vector<64x128xi32>
    %49 = arith.extui %48 : vector<64x128xi1> to vector<64x128xi32>
    %50 = arith.sitofp %49 : vector<64x128xi32> to vector<64x128xf32>
    %51 = arith.addf %45, %50 : vector<64x128xf32>
    %52 = vector.extract_strided_slice %1 {offsets = [0, 7], sizes = [64, 1], strides = [1, 1]} : vector<64x8xi32> to vector<64x1xi32>
    %53 = vector.broadcast %52 : vector<64x1xi32> to vector<64x128xi32>
    %54 = arith.cmpi eq, %53, %8 : vector<64x128xi32>
    %55 = arith.extui %54 : vector<64x128xi1> to vector<64x128xi32>
    %56 = arith.sitofp %55 : vector<64x128xi32> to vector<64x128xf32>
    %57 = arith.addf %51, %56 : vector<64x128xf32>
    %58 = arith.truncf %57 : vector<64x128xf32> to vector<64x128xbf16>
    %cst_12 = arith.constant dense<0.000000e+00> : vector<64x128xf32>
    %59 = tpu.matmul %58, %6, %cst_12 {dimension_numbers = #tpu.dot_dimension_numbers<[1], [0], [0], [1], [0, 0, 1, 1], [], []>} : vector<64x128xbf16>, vector<128x128xbf16>, vector<64x128xf32> -> vector<64x128xf32>
    %60 = arith.truncf %59 : vector<64x128xf32> to vector<64x128xbf16>
    %cst_13 = arith.constant dense<0.000000e+00> : vector<64x128xf32>
    %61 = tpu.matmul %3, %60, %cst_13 {dimension_numbers = #tpu.dot_dimension_numbers<[1], [0], [0], [1], [0, 0, 1, 1], [], []>} : vector<64x64xbf16>, vector<64x128xbf16>, vector<64x128xf32> -> vector<64x128xf32>
    %62 = vector.broadcast %7 : vector<1x128xf32> to vector<64x128xf32>
    %63 = arith.addf %61, %62 : vector<64x128xf32>
    %cst_14 = arith.constant 0.000000e+00 : f32
    %64 = vector.broadcast %cst_14 : f32 to vector<64x128xf32>
    %65 = arith.maximumf %63, %64 : vector<64x128xf32>
    %66 = vector.shape_cast %65 : vector<64x128xf32> to vector<4x16x128xf32>
    %67 = vector.shape_cast %5 : vector<64x1xi32> to vector<4x16x1xi32>
    %cst_15 = arith.constant 0.000000e+00 : f32
    %68 = vector.broadcast %cst_15 : f32 to vector<4x8x128xf32>
    %c0_16 = arith.constant 0 : index
    %c0_17 = arith.constant 0 : index
    %c0_18 = arith.constant 0 : index
    %69 = vector.load %arg6[%c0_16, %c0_17, %c0_18] : memref<4x8x128xf32, #tpu.memory_space<vmem>>, vector<4x8x128xf32>
    tpu.vector_store %arg6[%c0_16, %c0_17, %c0_18], %68 {strides = array<i32>} : memref<4x8x128xf32, #tpu.memory_space<vmem>>, vector<4x8x128xf32>,
    %c0_i32 = arith.constant 0 : i32
    %70 = vector.broadcast %c0_i32 : i32 to vector<4x16x1xi32>
    %71 = arith.cmpi eq, %67, %70 : vector<4x16x1xi32>
    %cst_19 = arith.constant 0.000000e+00 : f32
    %72 = vector.shape_cast %71 : vector<4x16x1xi1> to vector<4x16x1xi1>
    %73 = vector.broadcast %72 : vector<4x16x1xi1> to vector<4x16x128xi1>
    %74 = vector.broadcast %cst_19 : f32 to vector<4x16x128xf32>
    %75 = arith.select %73, %66, %74 : vector<4x16x128xi1>, vector<4x16x128xf32>
    %cst_20 = arith.constant dense<0xFF800000> : vector<4x128xf32>
    %76 = vector.multi_reduction <maximumf>, %75, %cst_20 [1] : vector<4x16x128xf32> to vector<4x128xf32>
    %c0_21 = arith.constant 0 : index
    %c0_22 = arith.constant 0 : index
    %c0_23 = arith.constant 0 : index
    %77 = vector.load %arg6[%c0_21, %c0_22, %c0_23] : memref<4x8x128xf32, #tpu.memory_space<vmem>>, vector<4x1x128xf32>
    %78 = vector.shape_cast %77 : vector<4x1x128xf32> to vector<4x128xf32>
    %79 = vector.shape_cast %76 : vector<4x128xf32> to vector<4x1x128xf32>
    tpu.vector_store %arg6[%c0_21, %c0_22, %c0_23], %79 {strides = array<i32>} : memref<4x8x128xf32, #tpu.memory_space<vmem>>, vector<4x1x128xf32>,
    %c1_i32 = arith.constant 1 : i32
    %80 = vector.broadcast %c1_i32 : i32 to vector<4x16x1xi32>
    %81 = arith.cmpi eq, %67, %80 : vector<4x16x1xi32>
    %cst_24 = arith.constant 0.000000e+00 : f32
    %82 = vector.shape_cast %81 : vector<4x16x1xi1> to vector<4x16x1xi1>
    %83 = vector.broadcast %82 : vector<4x16x1xi1> to vector<4x16x128xi1>
    %84 = vector.broadcast %cst_24 : f32 to vector<4x16x128xf32>
    %85 = arith.select %83, %66, %84 : vector<4x16x128xi1>, vector<4x16x128xf32>
    %cst_25 = arith.constant dense<0xFF800000> : vector<4x128xf32>
    %86 = vector.multi_reduction <maximumf>, %85, %cst_25 [1] : vector<4x16x128xf32> to vector<4x128xf32>
    %c0_26 = arith.constant 0 : index
    %c1 = arith.constant 1 : index
    %c0_27 = arith.constant 0 : index
    %87 = vector.load %arg6[%c0_26, %c1, %c0_27] : memref<4x8x128xf32, #tpu.memory_space<vmem>>, vector<4x1x128xf32>
    %88 = vector.shape_cast %87 : vector<4x1x128xf32> to vector<4x128xf32>
    %89 = vector.shape_cast %86 : vector<4x128xf32> to vector<4x1x128xf32>
    tpu.vector_store %arg6[%c0_26, %c1, %c0_27], %89 {strides = array<i32>} : memref<4x8x128xf32, #tpu.memory_space<vmem>>, vector<4x1x128xf32>,
    return
  }
  func.func @transform_0(%arg0: i32) -> (i32, i32, i32) {
    %c0_i32 = arith.constant 0 : i32
    %c0_i32_0 = arith.constant 0 : i32
    %c0_i32_1 = arith.constant 0 : i32
    return %arg0, %c0_i32, %c0_i32_0 : i32, i32, i32
  }
  func.func @transform_1(%arg0: i32) -> (i32, i32) {
    %c0_i32 = arith.constant 0 : i32
    %c0_i32_0 = arith.constant 0 : i32
    %c0_i32_1 = arith.constant 0 : i32
    return %c0_i32, %c0_i32_0 : i32, i32
  }
  func.func @transform_2(%arg0: i32) -> (i32, i32, i32) {
    %c0_i32 = arith.constant 0 : i32
    %c0_i32_0 = arith.constant 0 : i32
    %c0_i32_1 = arith.constant 0 : i32
    return %arg0, %c0_i32, %c0_i32_0 : i32, i32, i32
  }
  func.func @transform_3(%arg0: i32) -> (i32, i32) {
    %c0_i32 = arith.constant 0 : i32
    %c0_i32_0 = arith.constant 0 : i32
    %c0_i32_1 = arith.constant 0 : i32
    return %c0_i32, %c0_i32_0 : i32, i32
  }
  func.func @transform_4(%arg0: i32) -> (i32, i32, i32) {
    %c0_i32 = arith.constant 0 : i32
    %c0_i32_0 = arith.constant 0 : i32
    %c0_i32_1 = arith.constant 0 : i32
    return %arg0, %c0_i32, %c0_i32_0 : i32, i32, i32
  }
  func.func @transform_5(%arg0: i32) -> (i32, i32, i32) {
    %c0_i32 = arith.constant 0 : i32
    %c0_i32_0 = arith.constant 0 : i32
    %c0_i32_1 = arith.constant 0 : i32
    return %arg0, %c0_i32, %c0_i32_0 : i32, i32, i32
  }
}

</mosaic_0001>

<llo_original>
// kernel: surrogate_encoder_forward.1
$region0: #{surrogate_encoder_forward.1}
  #allocation0 [shape = 'u32[]', space=smem, size = 0x4, offset = 0x4, fixed_abs, tag = 'smem constant byte address 0x4 - core index']
  #allocation1 [shape = 'u32[144,128]{1,0:T(1,128)}', space=vmem, size = 0x12000, scoped, tag = 'internal scratch']
  %s0 = inlined_call_operand.vmem [shape: s32[2,64,8], index: 0, kind: input, shape index: {}]
  %s1 = inlined_call_operand.vmem [shape: bf16[128,128], index: 1, kind: input, shape index: {}]
  %s2 = inlined_call_operand.vmem [shape: bf16[2,64,64], index: 2, kind: input, shape index: {}]
  %s3 = inlined_call_operand.vmem [shape: f32[1,128], index: 3, kind: input, shape index: {}]
  %s4 = inlined_call_operand.vmem [shape: s32[2,64,1], index: 4, kind: input, shape index: {}]
  %s5 = inlined_call_operand.vmem [shape: f32[8,8,128], index: 5, kind: output, shape index: {}]
  %s6 = sld [smem:[#allocation0]]
  $region53: #{surrogate_encoder_forward.1} parent=0
    _
  %s8 = ssub.s32 1, %s6
  %s9 = scalar_select 0, %s8, %s6
  loop: start=0, step=1, limit=4
  $region2: #{surrogate_encoder_forward.1} parent=0 // loop_pre_header
    _
  $region3: #{surrogate_encoder_forward.1} parent=0 // loop_header
    %s11 = sphi 0, %s15
    %p12 = scmp.ge.s32.totalorder %s11, 4
    %s21 = sphi 0, %s23
    %s24 = sphi 0, %s21
    %s25 = sphi 0, %s24
    %s41 = sphi 0, %s25
    %s45 = sphi 0, %s45
    %s47 = sphi 0, %s45
    %s48 = sphi 0, %s47
    %s62 = sphi 0, %s48
    %s68 = sphi 0, %s70
    %s71 = sphi 0, %s68
    %s72 = sphi 0, %s71
    %s88 = sphi 0, %s72
    %s92 = sphi 0, %s92
    %s94 = sphi 0, %s92
    %s95 = sphi 0, %s94
    %s109 = sphi 0, %s95
    %s115 = sphi 0, %s117
    %s118 = sphi 0, %s115
    %s119 = sphi 0, %s118
    %s135 = sphi 0, %s119
    %s141 = sphi 0, %s143
    %s144 = sphi 0, %s141
    %s145 = sphi 0, %s144
    %s161 = sphi 0, %s145
  $region4: #{surrogate_encoder_forward.1} parent=0 // loop_header_branch
    %14 = sbr.rel (%p12) target = $region8
  $region5: #{surrogate_encoder_forward.1} parent=0 // loop_body
    %s16 = ssub.s32 %s11, 1
    %s17 = ssub.s32 %s11, 2
    %s18 = sadd.s32 %s11, 1
    %s19 = ssub.s32 %s11, %s18
    %p20 = scmp.eq.s32.totalorder %s19, 0
    %s22 = sadd.s32 %s21, 1
    %s23 = scalar_select %p20, %s21, %s22
    %p26 = pneg %p20
    %p27 = scmp.eq.s32.totalorder %s11, 1
    %p28 = por %p26, %p27
    %p29 = scmp.ne.s32.totalorder %s21, %s24
    %p30 = scmp.eq.s32.totalorder %s11, 0
    %p31 = por %p29, %p30
    %p32 = scmp.ne.s32.totalorder %s21, %s24
    %p33 = scmp.eq.s32.totalorder %s16, 1
    %p34 = por %p32, %p33
    %p35 = scmp.ne.s32.totalorder %s24, %s25
    %p36 = scmp.eq.s32.totalorder %s16, 0
    %p37 = por %p35, %p36
    %p38 = scmp.ne.s32.totalorder %s24, %s25
    %p39 = scmp.eq.s32.totalorder %s17, 1
    %p40 = por %p38, %p39
    %p42 = scmp.ne.s32.totalorder %s25, %s41
    %p43 = scmp.eq.s32.totalorder %s17, 0
    %p44 = por %p42, %p43
    %s46 = sadd.s32 %s45, 1
    %p49 = scmp.eq.s32.totalorder %s11, 1
    %p50 = scmp.ne.s32.totalorder %s45, %s47
    %p51 = scmp.eq.s32.totalorder %s11, 0
    %p52 = por %p50, %p51
    %p53 = scmp.ne.s32.totalorder %s45, %s47
    %p54 = scmp.eq.s32.totalorder %s16, 1
    %p55 = por %p53, %p54
    %p56 = scmp.ne.s32.totalorder %s47, %s48
    %p57 = scmp.eq.s32.totalorder %s16, 0
    %p58 = por %p56, %p57
    %p59 = scmp.ne.s32.totalorder %s47, %s48
    %p60 = scmp.eq.s32.totalorder %s17, 1
    %p61 = por %p59, %p60
    %p63 = scmp.ne.s32.totalorder %s48, %s62
    %p64 = scmp.eq.s32.totalorder %s17, 0
    %p65 = por %p63, %p64
    %s66 = ssub.s32 %s11, %s18
    %p67 = scmp.eq.s32.totalorder %s66, 0
    %s69 = sadd.s32 %s68, 1
    %s70 = scalar_select %p67, %s68, %s69
    %p73 = pneg %p67
    %p74 = scmp.eq.s32.totalorder %s11, 1
    %p75 = por %p73, %p74
    %p76 = scmp.ne.s32.totalorder %s68, %s71
    %p77 = scmp.eq.s32.totalorder %s11, 0
    %p78 = por %p76, %p77
    %p79 = scmp.ne.s32.totalorder %s68, %s71
    %p80 = scmp.eq.s32.totalorder %s16, 1
    %p81 = por %p79, %p80
    %p82 = scmp.ne.s32.totalorder %s71, %s72
    %p83 = scmp.eq.s32.totalorder %s16, 0
    %p84 = por %p82, %p83
    %p85 = scmp.ne.s32.totalorder %s71, %s72
    %p86 = scmp.eq.s32.totalorder %s17, 1
    %p87 = por %p85, %p86
    %p89 = scmp.ne.s32.totalorder %s72, %s88
    %p90 = scmp.eq.s32.totalorder %s17, 0
    %p91 = por %p89, %p90
    %s93 = sadd.s32 %s92, 1
    %p96 = scmp.eq.s32.totalorder %s11, 1
    %p97 = scmp.ne.s32.totalorder %s92, %s94
    %p98 = scmp.eq.s32.totalorder %s11, 0
    %p99 = por %p97, %p98
    %p100 = scmp.ne.s32.totalorder %s92, %s94
    %p101 = scmp.eq.s32.totalorder %s16, 1
    %p102 = por %p100, %p101
    %p103 = scmp.ne.s32.totalorder %s94, %s95
    %p104 = scmp.eq.s32.totalorder %s16, 0
    %p105 = por %p103, %p104
    %p106 = scmp.ne.s32.totalorder %s94, %s95
    %p107 = scmp.eq.s32.totalorder %s17, 1
    %p108 = por %p106, %p107
    %p110 = scmp.ne.s32.totalorder %s95, %s109
    %p111 = scmp.eq.s32.totalorder %s17, 0
    %p112 = por %p110, %p111
    %s113 = ssub.s32 %s11, %s18
    %p114 = scmp.eq.s32.totalorder %s113, 0
    %s116 = sadd.s32 %s115, 1
    %s117 = scalar_select %p114, %s115, %s116
    %p120 = pneg %p114
    %p121 = scmp.eq.s32.totalorder %s11, 1
    %p122 = por %p120, %p121
    %p123 = scmp.ne.s32.totalorder %s115, %s118
    %p124 = scmp.eq.s32.totalorder %s11, 0
    %p125 = por %p123, %p124
    %p126 = scmp.ne.s32.totalorder %s115, %s118
    %p127 = scmp.eq.s32.totalorder %s16, 1
    %p128 = por %p126, %p127
    %p129 = scmp.ne.s32.totalorder %s118, %s119
    %p130 = scmp.eq.s32.totalorder %s16, 0
    %p131 = por %p129, %p130
    %p132 = scmp.ne.s32.totalorder %s118, %s119
    %p133 = scmp.eq.s32.totalorder %s17, 1
    %p134 = por %p132, %p133
    %p136 = scmp.ne.s32.totalorder %s119, %s135
    %p137 = scmp.eq.s32.totalorder %s17, 0
    %p138 = por %p136, %p137
    %s139 = ssub.s32 %s11, %s18
    %p140 = scmp.eq.s32.totalorder %s139, 0
    %s142 = sadd.s32 %s141, 1
    %s143 = scalar_select %p140, %s141, %s142
    %p146 = pneg %p140
    %p147 = scmp.eq.s32.totalorder %s11, 1
    %p148 = por %p146, %p147
    %p149 = scmp.ne.s32.totalorder %s141, %s144
    %p150 = scmp.eq.s32.totalorder %s11, 0
    %p151 = por %p149, %p150
    %p152 = scmp.ne.s32.totalorder %s141, %s144
    %p153 = scmp.eq.s32.totalorder %s16, 1
    %p154 = por %p152, %p153
    %p155 = scmp.ne.s32.totalorder %s144, %s145
    %p156 = scmp.eq.s32.totalorder %s16, 0
    %p157 = por %p155, %p156
    %p158 = scmp.ne.s32.totalorder %s144, %s145
    %p159 = scmp.eq.s32.totalorder %s17, 1
    %p160 = por %p158, %p159
    %p162 = scmp.ne.s32.totalorder %s145, %s161
    %p163 = scmp.eq.s32.totalorder %s17, 0
    %p164 = por %p162, %p163
    %p165 = scmp.le.s32.totalorder 1, %s11
    %p166 = scmp.lt.s32.totalorder %s11, 3
    %p167 = pnand %p165, %p166
    %p168 = pneg %p167
    // Predicated region
    $region9: #{surrogate_encoder_forward.1} parent=5 // pred_check
      _
    $region10: #{surrogate_encoder_forward.1} parent=5 // pred_check_branch
      %170 = sbr.rel (%p167) target = $region12
    $region11: #{surrogate_encoder_forward.1} parent=5 // pred_region
      %s171 = ssub.s32 %s11, 1
      // Predicated region
      $region13: #{surrogate_encoder_forward.1} parent=11 // pred_check
        %p172 = pneg %p58
      $region14: #{surrogate_encoder_forward.1} parent=11 // pred_check_branch
        %174 = sbr.rel (%p172) target = $region16
      $region15: #{surrogate_encoder_forward.1} parent=11 // pred_region
        _
      $region16: #{surrogate_encoder_forward.1} parent=11 // pred_fallthru
        _
      // Predicated region
      $region17: #{surrogate_encoder_forward.1} parent=11 // pred_check
        %p175 = pneg %p105
      $region18: #{surrogate_encoder_forward.1} parent=11 // pred_check_branch
        %177 = sbr.rel (%p175) target = $region20
      $region19: #{surrogate_encoder_forward.1} parent=11 // pred_region
        _
      $region20: #{surrogate_encoder_forward.1} parent=11 // pred_fallthru
        _
    $region12: #{surrogate_encoder_forward.1} parent=5 // pred_fallthru
      _
    %p178 = scmp.lt.s32.totalorder %s11, 2
    // Predicated region
    $region21: #{surrogate_encoder_forward.1} parent=5 // pred_check
      %p179 = pneg %p178
    $region22: #{surrogate_encoder_forward.1} parent=5 // pred_check_branch
      %181 = sbr.rel (%p179) target = $region24
    $region23: #{surrogate_encoder_forward.1} parent=5 // pred_region
      // Predicated region
      $region25: #{surrogate_encoder_forward.1} parent=23 // pred_check
        %p182 = pneg %p31
      $region26: #{surrogate_encoder_forward.1} parent=23 // pred_check_branch
        %184 = sbr.rel (%p182) target = $region28
      $region27: #{surrogate_encoder_forward.1} parent=23 // pred_region
        %p185 = scmp.lt.s32.totalorder %s11, 1
        %s186 = scalar_select %p185, %s11, 1
        %s187 = smul.addr %s186, 8
        %s188 = smul.addr %s187, 8
        %s189 = scalar_lea.vmem %s0, %s188
      $region28: #{surrogate_encoder_forward.1} parent=23 // pred_fallthru
        _
      // Predicated region
      $region29: #{surrogate_encoder_forward.1} parent=23 // pred_check
        %p190 = pneg %p78
      $region30: #{surrogate_encoder_forward.1} parent=23 // pred_check_branch
        %192 = sbr.rel (%p190) target = $region32
      $region31: #{surrogate_encoder_forward.1} parent=23 // pred_region
        %p193 = scmp.lt.s32.totalorder %s11, 1
        %s194 = scalar_select %p193, %s11, 1
        %s195 = smul.addr %s194, 8
        %s196 = smul.addr %s195, 4
        %s197 = scalar_lea.vmem %s2, %s196
      $region32: #{surrogate_encoder_forward.1} parent=23 // pred_fallthru
        _
      // Predicated region
      $region33: #{surrogate_encoder_forward.1} parent=23 // pred_check
        %p198 = pneg %p125
      $region34: #{surrogate_encoder_forward.1} parent=23 // pred_check_branch
        %200 = sbr.rel (%p198) target = $region36
      $region35: #{surrogate_encoder_forward.1} parent=23 // pred_region
        %p201 = scmp.lt.s32.totalorder %s11, 1
        %s202 = scalar_select %p201, %s11, 1
        %s203 = smul.addr %s202, 8
        %s204 = smul.addr %s203, 8
        %s205 = scalar_lea.vmem %s4, %s204
      $region36: #{surrogate_encoder_forward.1} parent=23 // pred_fallthru
        _
    $region24: #{surrogate_encoder_forward.1} parent=5 // pred_fallthru
      _
    %p206 = scmp.le.s32.totalorder 1, %s11
    %p207 = scmp.lt.s32.totalorder %s11, 3
    %p208 = pnand %p206, %p207
    %p209 = pneg %p208
    // Predicated region
    $region37: #{surrogate_encoder_forward.1} parent=5 // pred_check
      _
    $region38: #{surrogate_encoder_forward.1} parent=5 // pred_check_branch
      %211 = sbr.rel (%p208) target = $region40
    $region39: #{surrogate_encoder_forward.1} parent=5 // pred_region
      %s212 = ssub.s32 %s11, 1
      %p213 = scmp.lt.s32.totalorder %s16, 1
      %s214 = scalar_select %p213, %s16, 1
      %s215 = smul.addr %s214, 8
      %s216 = smul.addr %s215, 8
      %s217 = scalar_lea.vmem %s0, %s216
      %p218 = pneg %p37
      %p219 = pneg %p34
      %p220 = pneg %p58
      %p221 = pneg %p55
      %p222 = scmp.lt.s32.totalorder %s16, 1
      %s223 = scalar_select %p222, %s16, 1
      %s224 = smul.addr %s223, 8
      %s225 = smul.addr %s224, 4
      %s226 = scalar_lea.vmem %s2, %s225
      %p227 = pneg %p84
      %p228 = pneg %p81
      %p229 = pneg %p105
      %p230 = pneg %p102
      %p231 = scmp.lt.s32.totalorder %s16, 1
      %s232 = scalar_select %p231, %s16, 1
      %s233 = smul.addr %s232, 8
      %s234 = smul.addr %s233, 8
      %s235 = scalar_lea.vmem %s4, %s234
      %p236 = pneg %p131
      %p237 = pneg %p128
      %p238 = pneg %p157
      %p239 = pneg %p154
      %s240 = smul.u32 4, %s16
      %p241 = scmp.lt.s32.totalorder %s240, 7
      %s242 = scalar_select %p241, %s240, 7
      %s243 = smul.addr %s242, 8
      %s244 = scalar_lea.vmem %s5, %s243
      %p245 = scmp.lt.s32.totalorder %s16, 1
      %s246 = scalar_select %p245, %s16, 1
      %s247 = smul.addr %s246, 8
      %s248 = smul.addr %s247, 8
      %s249 = scalar_lea.vmem %s0, %s248
      %p250 = scmp.lt.s32.totalorder %s16, 1
      %s251 = scalar_select %p250, %s16, 1
      %s252 = smul.addr %s251, 8
      %s253 = smul.addr %s252, 4
      %s254 = scalar_lea.vmem %s2, %s253
      %p255 = scmp.lt.s32.totalorder %s16, 1
      %s256 = scalar_select %p255, %s16, 1
      %s257 = smul.addr %s256, 8
      %s258 = smul.addr %s257, 8
      %s259 = scalar_lea.vmem %s4, %s258
      %s260 = smul.u32 4, %s16
      %p261 = scmp.lt.s32.totalorder %s260, 7
      %s262 = scalar_select %p261, %s260, 7
      %s263 = smul.addr %s262, 8
      %s264 = scalar_lea.vmem %s5, %s263
      %s265 = smul.u32 4, %s16
      %v267 = vld [vmem:[%s249] sm:$0xff]
      %v268 = vld [vmem:[%s249 + $0x8] sm:$0xff]
      %v269 = vld [vmem:[%s249 + $0x10] sm:$0xff]
      %v270 = vld [vmem:[%s249 + $0x18] sm:$0xff]
      %v271 = vld [vmem:[%s249 + $0x20] sm:$0xff]
      %v272 = vld [vmem:[%s249 + $0x28] sm:$0xff]
      %v273 = vld [vmem:[%s249 + $0x30] sm:$0xff]
      %v274 = vld [vmem:[%s249 + $0x38] sm:$0xff]
      %v275 = vld [vmem:[%s254] sm:$0xf]
      %v276 = vld [vmem:[%s254 + $0x4] sm:$0xf]
      %v277 = vld [vmem:[%s254 + $0x8] sm:$0xf]
      %v278 = vld [vmem:[%s254 + $0xc] sm:$0xf]
      %v279 = vld [vmem:[%s254 + $0x10] sm:$0xf]
      %v280 = vld [vmem:[%s254 + $0x14] sm:$0xf]
      %v281 = vld [vmem:[%s254 + $0x18] sm:$0xf]
      %v282 = vld [vmem:[%s254 + $0x1c] sm:$0xf]
      %v283 = vld [vmem:[%s259] sm:$0xff]
      %v284 = vld [vmem:[%s259 + $0x8] sm:$0xff]
      %v285 = vld [vmem:[%s259 + $0x10] sm:$0xff]
      %v286 = vld [vmem:[%s259 + $0x18] sm:$0xff]
      %v287 = vld [vmem:[%s259 + $0x20] sm:$0xff]
      %v288 = vld [vmem:[%s259 + $0x28] sm:$0xff]
      %v289 = vld [vmem:[%s259 + $0x30] sm:$0xff]
      %v290 = vld [vmem:[%s259 + $0x38] sm:$0xff]
      %v291 = vld [vmem:[%s1] sm:$0xf]
      %v292 = vld [vmem:[%s1 + $0x4] sm:$0xf]
      %v293 = vld [vmem:[%s1 + $0x8] sm:$0xf]
      %v294 = vld [vmem:[%s1 + $0xc] sm:$0xf]
      %v295 = vld [vmem:[%s1 + $0x10] sm:$0xf]
      %v296 = vld [vmem:[%s1 + $0x14] sm:$0xf]
      %v297 = vld [vmem:[%s1 + $0x18] sm:$0xf]
      %v298 = vld [vmem:[%s1 + $0x1c] sm:$0xf]
      %v299 = vld [vmem:[%s1 + $0x20] sm:$0xf]
      %v300 = vld [vmem:[%s1 + $0x24] sm:$0xf]
      %v301 = vld [vmem:[%s1 + $0x28] sm:$0xf]
      %v302 = vld [vmem:[%s1 + $0x2c] sm:$0xf]
      %v303 = vld [vmem:[%s1 + $0x30] sm:$0xf]
      %v304 = vld [vmem:[%s1 + $0x34] sm:$0xf]
      %v305 = vld [vmem:[%s1 + $0x38] sm:$0xf]
      %v306 = vld [vmem:[%s1 + $0x3c] sm:$0xf]
      %v307 = vld [vmem:[%s3] sm:$0x1]
      %v308 = vlaneseq
      %v309 = vand.u32 %v308, 127
      %310 = vset.pattern.permute.xlu0 0
      %311 = vperm.xlu0 %310, %v267
      %v312 = vpop.permute.xlu0 %311
      %313 = vset.pattern.permute.xlu0 0
      %314 = vperm.xlu0 %313, %v268
      %v315 = vpop.permute.xlu0 %314
      %316 = vset.pattern.permute.xlu0 0
      %317 = vperm.xlu0 %316, %v269
      %v318 = vpop.permute.xlu0 %317
      %319 = vset.pattern.permute.xlu0 0
      %320 = vperm.xlu0 %319, %v270
      %v321 = vpop.permute.xlu0 %320
      %322 = vset.pattern.permute.xlu0 0
      %323 = vperm.xlu0 %322, %v271
      %v324 = vpop.permute.xlu0 %323
      %325 = vset.pattern.permute.xlu0 0
      %326 = vperm.xlu0 %325, %v272
      %v327 = vpop.permute.xlu0 %326
      %328 = vset.pattern.permute.xlu0 0
      %329 = vperm.xlu0 %328, %v273
      %v330 = vpop.permute.xlu0 %329
      %331 = vset.pattern.permute.xlu0 0
      %332 = vperm.xlu0 %331, %v274
      %v333 = vpop.permute.xlu0 %332
      %vm334 = vcmp.eq.s32.totalorder %v312, %v309
      %vm335 = vcmp.eq.s32.totalorder %v315, %v309
      %vm336 = vcmp.eq.s32.totalorder %v318, %v309
      %vm337 = vcmp.eq.s32.totalorder %v321, %v309
      %vm338 = vcmp.eq.s32.totalorder %v324, %v309
      %vm339 = vcmp.eq.s32.totalorder %v327, %v309
      %vm340 = vcmp.eq.s32.totalorder %v330, %v309
      %vm341 = vcmp.eq.s32.totalorder %v333, %v309
      %v342 = vsel %vm334, 1, 0
      %v343 = vsel %vm335, 1, 0
      %v344 = vsel %vm336, 1, 0
      %v345 = vsel %vm337, 1, 0
      %v346 = vsel %vm338, 1, 0
      %v347 = vsel %vm339, 1, 0
      %v348 = vsel %vm340, 1, 0
      %v349 = vsel %vm341, 1, 0
      %v350 = vcvt.s32.f32 %v342
      %v351 = vcvt.s32.f32 %v343
      %v352 = vcvt.s32.f32 %v344
      %v353 = vcvt.s32.f32 %v345
      %v354 = vcvt.s32.f32 %v346
      %v355 = vcvt.s32.f32 %v347
      %v356 = vcvt.s32.f32 %v348
      %v357 = vcvt.s32.f32 %v349
      %v358 = vadd.f32 %v350, 0.0
      %v359 = vadd.f32 %v351, 0.0
      %v360 = vadd.f32 %v352, 0.0
      %v361 = vadd.f32 %v353, 0.0
      %v362 = vadd.f32 %v354, 0.0
      %v363 = vadd.f32 %v355, 0.0
      %v364 = vadd.f32 %v356, 0.0
      %v365 = vadd.f32 %v357, 0.0
      %366 = vset.pattern.permute.xlu0 1
      %367 = vperm.xlu0 %366, %v267
      %v368 = vpop.permute.xlu0 %367
      %369 = vset.pattern.permute.xlu0 1
      %370 = vperm.xlu0 %369, %v268
      %v371 = vpop.permute.xlu0 %370
      %372 = vset.pattern.permute.xlu0 1
      %373 = vperm.xlu0 %372, %v269
      %v374 = vpop.permute.xlu0 %373
      %375 = vset.pattern.permute.xlu0 1
      %376 = vperm.xlu0 %375, %v270
      %v377 = vpop.permute.xlu0 %376
      %378 = vset.pattern.permute.xlu0 1
      %379 = vperm.xlu0 %378, %v271
      %v380 = vpop.permute.xlu0 %379
      %381 = vset.pattern.permute.xlu0 1
      %382 = vperm.xlu0 %381, %v272
      %v383 = vpop.permute.xlu0 %382
      %384 = vset.pattern.permute.xlu0 1
      %385 = vperm.xlu0 %384, %v273
      %v386 = vpop.permute.xlu0 %385
      %387 = vset.pattern.permute.xlu0 1
      %388 = vperm.xlu0 %387, %v274
      %v389 = vpop.permute.xlu0 %388
      %vm390 = vcmp.eq.s32.totalorder %v368, %v309
      %vm391 = vcmp.eq.s32.totalorder %v371, %v309
      %vm392 = vcmp.eq.s32.totalorder %v374, %v309
      %vm393 = vcmp.eq.s32.totalorder %v377, %v309
      %vm394 = vcmp.eq.s32.totalorder %v380, %v309
      %vm395 = vcmp.eq.s32.totalorder %v383, %v309
      %vm396 = vcmp.eq.s32.totalorder %v386, %v309
      %vm397 = vcmp.eq.s32.totalorder %v389, %v309
      %v398 = vsel %vm390, 1, 0
      %v399 = vsel %vm391, 1, 0
      %v400 = vsel %vm392, 1, 0
      %v401 = vsel %vm393, 1, 0
      %v402 = vsel %vm394, 1, 0
      %v403 = vsel %vm395, 1, 0
      %v404 = vsel %vm396, 1, 0
      %v405 = vsel %vm397, 1, 0
      %v406 = vcvt.s32.f32 %v398
      %v407 = vcvt.s32.f32 %v399
      %v408 = vcvt.s32.f32 %v400
      %v409 = vcvt.s32.f32 %v401
      %v410 = vcvt.s32.f32 %v402
      %v411 = vcvt.s32.f32 %v403
      %v412 = vcvt.s32.f32 %v404
      %v413 = vcvt.s32.f32 %v405
      %v414 = vadd.f32 %v358, %v406
      %v415 = vadd.f32 %v359, %v407
      %v416 = vadd.f32 %v360, %v408
      %v417 = vadd.f32 %v361, %v409
      %v418 = vadd.f32 %v362, %v410
      %v419 = vadd.f32 %v363, %v411
      %v420 = vadd.f32 %v364, %v412
      %v421 = vadd.f32 %v365, %v413
      %422 = vset.pattern.permute.xlu0 2
      %423 = vperm.xlu0 %422, %v267
      %v424 = vpop.permute.xlu0 %423
      %425 = vset.pattern.permute.xlu0 2
      %426 = vperm.xlu0 %425, %v268
      %v427 = vpop.permute.xlu0 %426
      %428 = vset.pattern.permute.xlu0 2
      %429 = vperm.xlu0 %428, %v269
      %v430 = vpop.permute.xlu0 %429
      %431 = vset.pattern.permute.xlu0 2
      %432 = vperm.xlu0 %431, %v270
      %v433 = vpop.permute.xlu0 %432
      %434 = vset.pattern.permute.xlu0 2
      %435 = vperm.xlu0 %434, %v271
      %v436 = vpop.permute.xlu0 %435
      %437 = vset.pattern.permute.xlu0 2
      %438 = vperm.xlu0 %437, %v272
      %v439 = vpop.permute.xlu0 %438
      %440 = vset.pattern.permute.xlu0 2
      %441 = vperm.xlu0 %440, %v273
      %v442 = vpop.permute.xlu0 %441
      %443 = vset.pattern.permute.xlu0 2
      %444 = vperm.xlu0 %443, %v274
      %v445 = vpop.permute.xlu0 %444
      %vm446 = vcmp.eq.s32.totalorder %v424, %v309
      %vm447 = vcmp.eq.s32.totalorder %v427, %v309
      %vm448 = vcmp.eq.s32.totalorder %v430, %v309
      %vm449 = vcmp.eq.s32.totalorder %v433, %v309
      %vm450 = vcmp.eq.s32.totalorder %v436, %v309
      %vm451 = vcmp.eq.s32.totalorder %v439, %v309
      %vm452 = vcmp.eq.s32.totalorder %v442, %v309
      %vm453 = vcmp.eq.s32.totalorder %v445, %v309
      %v454 = vsel %vm446, 1, 0
      %v455 = vsel %vm447, 1, 0
      %v456 = vsel %vm448, 1, 0
      %v457 = vsel %vm449, 1, 0
      %v458 = vsel %vm450, 1, 0
      %v459 = vsel %vm451, 1, 0
      %v460 = vsel %vm452, 1, 0
      %v461 = vsel %vm453, 1, 0
      %v462 = vcvt.s32.f32 %v454
      %v463 = vcvt.s32.f32 %v455
      %v464 = vcvt.s32.f32 %v456
      %v465 = vcvt.s32.f32 %v457
      %v466 = vcvt.s32.f32 %v458
      %v467 = vcvt.s32.f32 %v459
      %v468 = vcvt.s32.f32 %v460
      %v469 = vcvt.s32.f32 %v461
      %v470 = vadd.f32 %v414, %v462
      %v471 = vadd.f32 %v415, %v463
      %v472 = vadd.f32 %v416, %v464
      %v473 = vadd.f32 %v417, %v465
      %v474 = vadd.f32 %v418, %v466
      %v475 = vadd.f32 %v419, %v467
      %v476 = vadd.f32 %v420, %v468
      %v477 = vadd.f32 %v421, %v469
      %478 = vset.pattern.permute.xlu0 3
      %479 = vperm.xlu0 %478, %v267
      %v480 = vpop.permute.xlu0 %479
      %481 = vset.pattern.permute.xlu0 3
      %482 = vperm.xlu0 %481, %v268
      %v483 = vpop.permute.xlu0 %482
      %484 = vset.pattern.permute.xlu0 3
      %485 = vperm.xlu0 %484, %v269
      %v486 = vpop.permute.xlu0 %485
      %487 = vset.pattern.permute.xlu0 3
      %488 = vperm.xlu0 %487, %v270
      %v489 = vpop.permute.xlu0 %488
      %490 = vset.pattern.permute.xlu0 3
      %491 = vperm.xlu0 %490, %v271
      %v492 = vpop.permute.xlu0 %491
      %493 = vset.pattern.permute.xlu0 3
      %494 = vperm.xlu0 %493, %v272
      %v495 = vpop.permute.xlu0 %494
      %496 = vset.pattern.permute.xlu0 3
      %497 = vperm.xlu0 %496, %v273
      %v498 = vpop.permute.xlu0 %497
      %499 = vset.pattern.permute.xlu0 3
      %500 = vperm.xlu0 %499, %v274
      %v501 = vpop.permute.xlu0 %500
      %vm502 = vcmp.eq.s32.totalorder %v480, %v309
      %vm503 = vcmp.eq.s32.totalorder %v483, %v309
      %vm504 = vcmp.eq.s32.totalorder %v486, %v309
      %vm505 = vcmp.eq.s32.totalorder %v489, %v309
      %vm506 = vcmp.eq.s32.totalorder %v492, %v309
      %vm507 = vcmp.eq.s32.totalorder %v495, %v309
      %vm508 = vcmp.eq.s32.totalorder %v498, %v309
      %vm509 = vcmp.eq.s32.totalorder %v501, %v309
      %v510 = vsel %vm502, 1, 0
      %v511 = vsel %vm503, 1, 0
      %v512 = vsel %vm504, 1, 0
      %v513 = vsel %vm505, 1, 0
      %v514 = vsel %vm506, 1, 0
      %v515 = vsel %vm507, 1, 0
      %v516 = vsel %vm508, 1, 0
      %v517 = vsel %vm509, 1, 0
      %v518 = vcvt.s32.f32 %v510
      %v519 = vcvt.s32.f32 %v511
      %v520 = vcvt.s32.f32 %v512
      %v521 = vcvt.s32.f32 %v513
      %v522 = vcvt.s32.f32 %v514
      %v523 = vcvt.s32.f32 %v515
      %v524 = vcvt.s32.f32 %v516
      %v525 = vcvt.s32.f32 %v517
      %v526 = vadd.f32 %v470, %v518
      %v527 = vadd.f32 %v471, %v519
      %v528 = vadd.f32 %v472, %v520
      %v529 = vadd.f32 %v473, %v521
      %v530 = vadd.f32 %v474, %v522
      %v531 = vadd.f32 %v475, %v523
      %v532 = vadd.f32 %v476, %v524
      %v533 = vadd.f32 %v477, %v525
      %534 = vset.pattern.permute.xlu0 4
      %535 = vperm.xlu0 %534, %v267
      %v536 = vpop.permute.xlu0 %535
      %537 = vset.pattern.permute.xlu0 4
      %538 = vperm.xlu0 %537, %v268
      %v539 = vpop.permute.xlu0 %538
      %540 = vset.pattern.permute.xlu0 4
      %541 = vperm.xlu0 %540, %v269
      %v542 = vpop.permute.xlu0 %541
      %543 = vset.pattern.permute.xlu0 4
      %544 = vperm.xlu0 %543, %v270
      %v545 = vpop.permute.xlu0 %544
      %546 = vset.pattern.permute.xlu0 4
      %547 = vperm.xlu0 %546, %v271
      %v548 = vpop.permute.xlu0 %547
      %549 = vset.pattern.permute.xlu0 4
      %550 = vperm.xlu0 %549, %v272
      %v551 = vpop.permute.xlu0 %550
      %552 = vset.pattern.permute.xlu0 4
      %553 = vperm.xlu0 %552, %v273
      %v554 = vpop.permute.xlu0 %553
      %555 = vset.pattern.permute.xlu0 4
      %556 = vperm.xlu0 %555, %v274
      %v557 = vpop.permute.xlu0 %556
      %vm558 = vcmp.eq.s32.totalorder %v536, %v309
      %vm559 = vcmp.eq.s32.totalorder %v539, %v309
      %vm560 = vcmp.eq.s32.totalorder %v542, %v309
      %vm561 = vcmp.eq.s32.totalorder %v545, %v309
      %vm562 = vcmp.eq.s32.totalorder %v548, %v309
      %vm563 = vcmp.eq.s32.totalorder %v551, %v309
      %vm564 = vcmp.eq.s32.totalorder %v554, %v309
      %vm565 = vcmp.eq.s32.totalorder %v557, %v309
      %v566 = vsel %vm558, 1, 0
      %v567 = vsel %vm559, 1, 0
      %v568 = vsel %vm560, 1, 0
      %v569 = vsel %vm561, 1, 0
      %v570 = vsel %vm562, 1, 0
      %v571 = vsel %vm563, 1, 0
      %v572 = vsel %vm564, 1, 0
      %v573 = vsel %vm565, 1, 0
      %v574 = vcvt.s32.f32 %v566
      %v575 = vcvt.s32.f32 %v567
      %v576 = vcvt.s32.f32 %v568
      %v577 = vcvt.s32.f32 %v569
      %v578 = vcvt.s32.f32 %v570
      %v579 = vcvt.s32.f32 %v571
      %v580 = vcvt.s32.f32 %v572
      %v581 = vcvt.s32.f32 %v573
      %v582 = vadd.f32 %v526, %v574
      %v583 = vadd.f32 %v527, %v575
      %v584 = vadd.f32 %v528, %v576
      %v585 = vadd.f32 %v529, %v577
      %v586 = vadd.f32 %v530, %v578
      %v587 = vadd.f32 %v531, %v579
      %v588 = vadd.f32 %v532, %v580
      %v589 = vadd.f32 %v533, %v581
      %590 = vset.pattern.permute.xlu0 5
      %591 = vperm.xlu0 %590, %v267
      %v592 = vpop.permute.xlu0 %591
      %593 = vset.pattern.permute.xlu0 5
      %594 = vperm.xlu0 %593, %v268
      %v595 = vpop.permute.xlu0 %594
      %596 = vset.pattern.permute.xlu0 5
      %597 = vperm.xlu0 %596, %v269
      %v598 = vpop.permute.xlu0 %597
      %599 = vset.pattern.permute.xlu0 5
      %600 = vperm.xlu0 %599, %v270
      %v601 = vpop.permute.xlu0 %600
      %602 = vset.pattern.permute.xlu0 5
      %603 = vperm.xlu0 %602, %v271
      %v604 = vpop.permute.xlu0 %603
      %605 = vset.pattern.permute.xlu0 5
      %606 = vperm.xlu0 %605, %v272
      %v607 = vpop.permute.xlu0 %606
      %608 = vset.pattern.permute.xlu0 5
      %609 = vperm.xlu0 %608, %v273
      %v610 = vpop.permute.xlu0 %609
      %611 = vset.pattern.permute.xlu0 5
      %612 = vperm.xlu0 %611, %v274
      %v613 = vpop.permute.xlu0 %612
      %vm614 = vcmp.eq.s32.totalorder %v592, %v309
      %vm615 = vcmp.eq.s32.totalorder %v595, %v309
      %vm616 = vcmp.eq.s32.totalorder %v598, %v309
      %vm617 = vcmp.eq.s32.totalorder %v601, %v309
      %vm618 = vcmp.eq.s32.totalorder %v604, %v309
      %vm619 = vcmp.eq.s32.totalorder %v607, %v309
      %vm620 = vcmp.eq.s32.totalorder %v610, %v309
      %vm621 = vcmp.eq.s32.totalorder %v613, %v309
      %v622 = vsel %vm614, 1, 0
      %v623 = vsel %vm615, 1, 0
      %v624 = vsel %vm616, 1, 0
      %v625 = vsel %vm617, 1, 0
      %v626 = vsel %vm618, 1, 0
      %v627 = vsel %vm619, 1, 0
      %v628 = vsel %vm620, 1, 0
      %v629 = vsel %vm621, 1, 0
      %v630 = vcvt.s32.f32 %v622
      %v631 = vcvt.s32.f32 %v623
      %v632 = vcvt.s32.f32 %v624
      %v633 = vcvt.s32.f32 %v625
      %v634 = vcvt.s32.f32 %v626
      %v635 = vcvt.s32.f32 %v627
      %v636 = vcvt.s32.f32 %v628
      %v637 = vcvt.s32.f32 %v629
      %v638 = vadd.f32 %v582, %v630
      %v639 = vadd.f32 %v583, %v631
      %v640 = vadd.f32 %v584, %v632
      %v641 = vadd.f32 %v585, %v633
      %v642 = vadd.f32 %v586, %v634
      %v643 = vadd.f32 %v587, %v635
      %v644 = vadd.f32 %v588, %v636
      %v645 = vadd.f32 %v589, %v637
      %646 = vset.pattern.permute.xlu0 6
      %647 = vperm.xlu0 %646, %v267
      %v648 = vpop.permute.xlu0 %647
      %649 = vset.pattern.permute.xlu0 6
      %650 = vperm.xlu0 %649, %v268
      %v651 = vpop.permute.xlu0 %650
      %652 = vset.pattern.permute.xlu0 6
      %653 = vperm.xlu0 %652, %v269
      %v654 = vpop.permute.xlu0 %653
      %655 = vset.pattern.permute.xlu0 6
      %656 = vperm.xlu0 %655, %v270
      %v657 = vpop.permute.xlu0 %656
      %658 = vset.pattern.permute.xlu0 6
      %659 = vperm.xlu0 %658, %v271
      %v660 = vpop.permute.xlu0 %659
      %661 = vset.pattern.permute.xlu0 6
      %662 = vperm.xlu0 %661, %v272
      %v663 = vpop.permute.xlu0 %662
      %664 = vset.pattern.permute.xlu0 6
      %665 = vperm.xlu0 %664, %v273
      %v666 = vpop.permute.xlu0 %665
      %667 = vset.pattern.permute.xlu0 6
      %668 = vperm.xlu0 %667, %v274
      %v669 = vpop.permute.xlu0 %668
      %vm670 = vcmp.eq.s32.totalorder %v648, %v309
      %vm671 = vcmp.eq.s32.totalorder %v651, %v309
      %vm672 = vcmp.eq.s32.totalorder %v654, %v309
      %vm673 = vcmp.eq.s32.totalorder %v657, %v309
      %vm674 = vcmp.eq.s32.totalorder %v660, %v309
      %vm675 = vcmp.eq.s32.totalorder %v663, %v309
      %vm676 = vcmp.eq.s32.totalorder %v666, %v309
      %vm677 = vcmp.eq.s32.totalorder %v669, %v309
      %v678 = vsel %vm670, 1, 0
      %v679 = vsel %vm671, 1, 0
      %v680 = vsel %vm672, 1, 0
      %v681 = vsel %vm673, 1, 0
      %v682 = vsel %vm674, 1, 0
      %v683 = vsel %vm675, 1, 0
      %v684 = vsel %vm676, 1, 0
      %v685 = vsel %vm677, 1, 0
      %v686 = vcvt.s32.f32 %v678
      %v687 = vcvt.s32.f32 %v679
      %v688 = vcvt.s32.f32 %v680
      %v689 = vcvt.s32.f32 %v681
      %v690 = vcvt.s32.f32 %v682
      %v691 = vcvt.s32.f32 %v683
      %v692 = vcvt.s32.f32 %v684
      %v693 = vcvt.s32.f32 %v685
      %v694 = vadd.f32 %v638, %v686
      %v695 = vadd.f32 %v639, %v687
      %v696 = vadd.f32 %v640, %v688
      %v697 = vadd.f32 %v641, %v689
      %v698 = vadd.f32 %v642, %v690
      %v699 = vadd.f32 %v643, %v691
      %v700 = vadd.f32 %v644, %v692
      %v701 = vadd.f32 %v645, %v693
      %702 = vset.pattern.permute.xlu0 7
      %703 = vperm.xlu0 %702, %v267
      %v704 = vpop.permute.xlu0 %703
      %705 = vset.pattern.permute.xlu0 7
      %706 = vperm.xlu0 %705, %v268
      %v707 = vpop.permute.xlu0 %706
      %708 = vset.pattern.permute.xlu0 7
      %709 = vperm.xlu0 %708, %v269
      %v710 = vpop.permute.xlu0 %709
      %711 = vset.pattern.permute.xlu0 7
      %712 = vperm.xlu0 %711, %v270
      %v713 = vpop.permute.xlu0 %712
      %714 = vset.pattern.permute.xlu0 7
      %715 = vperm.xlu0 %714, %v271
      %v716 = vpop.permute.xlu0 %715
      %717 = vset.pattern.permute.xlu0 7
      %718 = vperm.xlu0 %717, %v272
      %v719 = vpop.permute.xlu0 %718
      %720 = vset.pattern.permute.xlu0 7
      %721 = vperm.xlu0 %720, %v273
      %v722 = vpop.permute.xlu0 %721
      %723 = vset.pattern.permute.xlu0 7
      %724 = vperm.xlu0 %723, %v274
      %v725 = vpop.permute.xlu0 %724
      %vm726 = vcmp.eq.s32.totalorder %v704, %v309
      %vm727 = vcmp.eq.s32.totalorder %v707, %v309
      %vm728 = vcmp.eq.s32.totalorder %v710, %v309
      %vm729 = vcmp.eq.s32.totalorder %v713, %v309
      %vm730 = vcmp.eq.s32.totalorder %v716, %v309
      %vm731 = vcmp.eq.s32.totalorder %v719, %v309
      %vm732 = vcmp.eq.s32.totalorder %v722, %v309
      %vm733 = vcmp.eq.s32.totalorder %v725, %v309
      %v734 = vsel %vm726, 1, 0
      %v735 = vsel %vm727, 1, 0
      %v736 = vsel %vm728, 1, 0
      %v737 = vsel %vm729, 1, 0
      %v738 = vsel %vm730, 1, 0
      %v739 = vsel %vm731, 1, 0
      %v740 = vsel %vm732, 1, 0
      %v741 = vsel %vm733, 1, 0
      %v742 = vcvt.s32.f32 %v734
      %v743 = vcvt.s32.f32 %v735
      %v744 = vcvt.s32.f32 %v736
      %v745 = vcvt.s32.f32 %v737
      %v746 = vcvt.s32.f32 %v738
      %v747 = vcvt.s32.f32 %v739
      %v748 = vcvt.s32.f32 %v740
      %v749 = vcvt.s32.f32 %v741
      %v750 = vadd.f32 %v694, %v742
      %v751 = vadd.f32 %v695, %v743
      %v752 = vadd.f32 %v696, %v744
      %v753 = vadd.f32 %v697, %v745
      %v754 = vadd.f32 %v698, %v746
      %v755 = vadd.f32 %v699, %v747
      %v756 = vadd.f32 %v700, %v748
      %v757 = vadd.f32 %v701, %v749
      %v758 = vpack.c.bf16 %v751, %v750
      %v759 = vpack.c.bf16 %v753, %v752
      %v760 = vpack.c.bf16 %v755, %v754
      %v761 = vpack.c.bf16 %v757, %v756
      %v778 = vunpack.c.l.b16 %v291
      %v779 = vunpack.c.l.b16 %v292
      %v780 = vunpack.c.l.b16 %v293
      %v781 = vunpack.c.l.b16 %v294
      %v782 = vunpack.c.l.b16 %v295
      %v783 = vunpack.c.l.b16 %v296
      %v784 = vunpack.c.l.b16 %v297
      %v785 = vunpack.c.l.b16 %v298
      %v786 = vunpack.c.l.b16 %v299
      %v787 = vunpack.c.l.b16 %v300
      %v788 = vunpack.c.l.b16 %v301
      %v789 = vunpack.c.l.b16 %v302
      %v790 = vunpack.c.l.b16 %v303
      %v791 = vunpack.c.l.b16 %v304
      %v792 = vunpack.c.l.b16 %v305
      %v793 = vunpack.c.l.b16 %v306
      %v794 = vpack.c.b16 %v779, %v778
      %v795 = vpack.c.b16 %v781, %v780
      %v796 = vpack.c.b16 %v783, %v782
      %v797 = vpack.c.b16 %v785, %v784
      %v798 = vpack.c.b16 %v787, %v786
      %v799 = vpack.c.b16 %v789, %v788
      %v800 = vpack.c.b16 %v791, %v790
      %v801 = vpack.c.b16 %v793, %v792
      %810 = vmatprep.subr.bf16.mxu0 0
      %811 = vmatpush1.bf16.msra.mxu0 %v794
      %812 = vmatprep.subr.bf16.mxu0 0
      %813 = vmatpush1.bf16.msra.mxu0 %v795
      %814 = vmatprep.subr.bf16.mxu0 0
      %815 = vmatpush1.bf16.msra.mxu0 %v796
      %816 = vmatprep.subr.bf16.mxu0 0
      %817 = vmatpush1.bf16.msra.mxu0 %v797
      %818 = vmatprep.subr.bf16.mxu0 0
      %819 = vmatpush1.bf16.msra.mxu0 %v798
      %820 = vmatprep.subr.bf16.mxu0 0
      %821 = vmatpush1.bf16.msra.mxu0 %v799
      %822 = vmatprep.subr.bf16.mxu0 0
      %823 = vmatpush1.bf16.msra.mxu0 %v800
      %824 = vmatprep.subr.bf16.mxu0 0
      %825 = vmatpush1.bf16.msra.mxu0 %v801
      %826 = vmatprep.subr.bf16.mxu0 0
      %827 = vmatpush1.bf16.msra.mxu0 0
      %828 = vmatprep.subr.bf16.mxu0 0
      %829 = vmatpush1.bf16.msra.mxu0 0
      %830 = vmatprep.subr.bf16.mxu0 0
      %831 = vmatpush1.bf16.msra.mxu0 0
      %832 = vmatprep.subr.bf16.mxu0 0
      %833 = vmatpush1.bf16.msra.mxu0 0
      %834 = vmatprep.subr.bf16.mxu0 0
      %835 = vmatpush1.bf16.msra.mxu0 0
      %836 = vmatprep.subr.bf16.mxu0 0
      %837 = vmatpush1.bf16.msra.mxu0 0
      %838 = vmatprep.subr.bf16.mxu0 0
      %839 = vmatpush1.bf16.msra.mxu0 0
      %840 = vmatprep.subr.bf16.mxu0 0
      %841 = vmatpush1.bf16.msra.mxu0 0
      %842 = vmatprep.mubr.bf16.mxu0 0
      %843 = vmatmul.mubr.bf16.gmra.mrb[0].mxu0 %v758
      %v844 = vpop.f32.mrb[0].mxu0
      %v845 = vadd.f32 0.0, %v844
      %v846 = vpop.f32.mrb[0].mxu0
      %v847 = vpop.f32.mrb[0].mxu0
      %v848 = vadd.f32 0.0, %v847
      %v849 = vpop.f32.mrb[0].mxu0
      %850 = vmatprep.mubr.bf16.mxu0 0
      %851 = vmatmul.mubr.bf16.gmra.mrb[0].mxu0 %v759
      %v852 = vpop.f32.mrb[0].mxu0
      %v853 = vadd.f32 0.0, %v852
      %v854 = vpop.f32.mrb[0].mxu0
      %v855 = vpop.f32.mrb[0].mxu0
      %v856 = vadd.f32 0.0, %v855
      %v857 = vpop.f32.mrb[0].mxu0
      %858 = vmatprep.mubr.bf16.mxu0 0
      %859 = vmatmul.mubr.bf16.gmra.mrb[0].mxu0 %v760
      %v860 = vpop.f32.mrb[0].mxu0
      %v861 = vadd.f32 0.0, %v860
      %v862 = vpop.f32.mrb[0].mxu0
      %v863 = vpop.f32.mrb[0].mxu0
      %v864 = vadd.f32 0.0, %v863
      %v865 = vpop.f32.mrb[0].mxu0
      %866 = vmatprep.mubr.bf16.mxu0 0
      %867 = vmatmul.mubr.bf16.gmra.mrb[0].mxu0 %v761
      %v868 = vpop.f32.mrb[0].mxu0
      %v869 = vadd.f32 0.0, %v868
      %v870 = vpop.f32.mrb[0].mxu0
      %v871 = vpop.f32.mrb[0].mxu0
      %v872 = vadd.f32 0.0, %v871
      %v873 = vpop.f32.mrb[0].mxu0
      %874 = vdwg.mxu0
      %v875 = vpack.c.bf16 %v848, %v845
      %v876 = vpack.c.bf16 %v856, %v853
      %v877 = vpack.c.bf16 %v864, %v861
      %v878 = vpack.c.bf16 %v872, %v869
      %v880 = vlaneseq
      %v881 = vshrl.u32 %v880, 7
      %v882 = vsub.s32 0, %v881
      %v883 = vrot.slane %v307, %v882
      %v893 = vunpack.c.l.b16 %v275
      %v894 = vunpack.c.l.b16 %v276
      %v895 = vunpack.c.l.b16 %v277
      %v896 = vunpack.c.l.b16 %v278
      %v897 = vunpack.c.l.b16 %v279
      %v898 = vunpack.c.l.b16 %v280
      %v899 = vunpack.c.l.b16 %v281
      %v900 = vunpack.c.l.b16 %v282
      %v901 = vpack.c.b16 %v894, %v893
      %v902 = vpack.c.b16 %v896, %v895
      %v903 = vpack.c.b16 %v898, %v897
      %v904 = vpack.c.b16 %v900, %v899
      %vm905 = vcmask 523264
      %v907 = vsel %vm905, %v901, 0
      %v910 = vsel %vm905, %v902, 0
      %v913 = vsel %vm905, %v903, 0
      %v916 = vsel %vm905, %v904, 0
      %918 = vmatprep.subr.bf16.mxu0 0
      %919 = vmatpush1.bf16.msra.mxu0 %v875
      %920 = vmatprep.subr.bf16.mxu0 0
      %921 = vmatpush1.bf16.msra.mxu0 %v876
      %922 = vmatprep.subr.bf16.mxu0 0
      %923 = vmatpush1.bf16.msra.mxu0 %v877
      %924 = vmatprep.subr.bf16.mxu0 0
      %925 = vmatpush1.bf16.msra.mxu0 %v878
      %926 = vmatprep.subr.bf16.mxu0 0
      %927 = vmatpush1.bf16.msra.mxu0 0
      %928 = vmatprep.subr.bf16.mxu0 0
      %929 = vmatpush1.bf16.msra.mxu0 0
      %930 = vmatprep.subr.bf16.mxu0 0
      %931 = vmatpush1.bf16.msra.mxu0 0
      %932 = vmatprep.subr.bf16.mxu0 0
      %933 = vmatpush1.bf16.msra.mxu0 0
      %934 = vmatprep.subr.bf16.mxu0 0
      %935 = vmatpush1.bf16.msra.mxu0 0
      %936 = vmatprep.subr.bf16.mxu0 0
      %937 = vmatpush1.bf16.msra.mxu0 0
      %938 = vmatprep.subr.bf16.mxu0 0
      %939 = vmatpush1.bf16.msra.mxu0 0
      %940 = vmatprep.subr.bf16.mxu0 0
      %941 = vmatpush1.bf16.msra.mxu0 0
      %942 = vmatprep.subr.bf16.mxu0 0
      %943 = vmatpush1.bf16.msra.mxu0 0
      %944 = vmatprep.subr.bf16.mxu0 0
      %945 = vmatpush1.bf16.msra.mxu0 0
      %946 = vmatprep.subr.bf16.mxu0 0
      %947 = vmatpush1.bf16.msra.mxu0 0
      %948 = vmatprep.subr.bf16.mxu0 0
      %949 = vmatpush1.bf16.msra.mxu0 0
      %950 = vmatprep.mubr.bf16.mxu0 0
      %951 = vmatmul.mubr.bf16.gmra.mrb[0].mxu0 %v907
      %v952 = vpop.f32.mrb[0].mxu0
      %v953 = vadd.f32 %v883, %v952
      %v954 = vpop.f32.mrb[0].mxu0
      %v955 = vpop.f32.mrb[0].mxu0
      %v956 = vadd.f32 %v883, %v955
      %v957 = vpop.f32.mrb[0].mxu0
      %958 = vmatprep.mubr.bf16.mxu0 0
      %959 = vmatmul.mubr.bf16.gmra.mrb[0].mxu0 %v910
      %v960 = vpop.f32.mrb[0].mxu0
      %v961 = vadd.f32 %v883, %v960
      %v962 = vpop.f32.mrb[0].mxu0
      %v963 = vpop.f32.mrb[0].mxu0
      %v964 = vadd.f32 %v883, %v963
      %v965 = vpop.f32.mrb[0].mxu0
      %966 = vmatprep.mubr.bf16.mxu0 0
      %967 = vmatmul.mubr.bf16.gmra.mrb[0].mxu0 %v913
      %v968 = vpop.f32.mrb[0].mxu0
      %v969 = vadd.f32 %v883, %v968
      %v970 = vpop.f32.mrb[0].mxu0
      %v971 = vpop.f32.mrb[0].mxu0
      %v972 = vadd.f32 %v883, %v971
      %v973 = vpop.f32.mrb[0].mxu0
      %974 = vmatprep.mubr.bf16.mxu0 0
      %975 = vmatmul.mubr.bf16.gmra.mrb[0].mxu0 %v916
      %v976 = vpop.f32.mrb[0].mxu0
      %v977 = vadd.f32 %v883, %v976
      %v978 = vpop.f32.mrb[0].mxu0
      %v979 = vpop.f32.mrb[0].mxu0
      %v980 = vadd.f32 %v883, %v979
      %v981 = vpop.f32.mrb[0].mxu0
      %982 = vdwg.mxu0
      %v983 = vmax.f32 %v953, 0.0
      %v984 = vmax.f32 %v956, 0.0
      %v985 = vmax.f32 %v961, 0.0
      %v986 = vmax.f32 %v964, 0.0
      %v987 = vmax.f32 %v969, 0.0
      %v988 = vmax.f32 %v972, 0.0
      %v989 = vmax.f32 %v977, 0.0
      %v990 = vmax.f32 %v980, 0.0
      %991 = vst [vmem:[%s264] sm:$0xff] 0.0
      %992 = vst [vmem:[%s264 + $0x8] sm:$0xff] 0.0
      %993 = vst [vmem:[%s264 + $0x10] sm:$0xff] 0.0
      %994 = vst [vmem:[%s264 + $0x18] sm:$0xff] 0.0
      %vm995 = vcmp.eq.s32.totalorder %v283, 0
      %vm996 = vcmp.eq.s32.totalorder %v284, 0
      %vm997 = vcmp.eq.s32.totalorder %v285, 0
      %vm998 = vcmp.eq.s32.totalorder %v286, 0
      %vm999 = vcmp.eq.s32.totalorder %v287, 0
      %vm1000 = vcmp.eq.s32.totalorder %v288, 0
      %vm1001 = vcmp.eq.s32.totalorder %v289, 0
      %vm1002 = vcmp.eq.s32.totalorder %v290, 0
      %v1003 = vsel %vm995, 1, 0
      %v1004 = vsel %vm996, 1, 0
      %v1005 = vsel %vm997, 1, 0
      %v1006 = vsel %vm998, 1, 0
      %v1007 = vsel %vm999, 1, 0
      %v1008 = vsel %vm1000, 1, 0
      %v1009 = vsel %vm1001, 1, 0
      %v1010 = vsel %vm1002, 1, 0
      %1011 = vset.pattern.permute.xlu0 0
      %1012 = vperm.xlu0 %1011, %v1003
      %v1013 = vpop.permute.xlu0 %1012
      %1014 = vset.pattern.permute.xlu0 0
      %1015 = vperm.xlu0 %1014, %v1004
      %v1016 = vpop.permute.xlu0 %1015
      %1017 = vset.pattern.permute.xlu0 0
      %1018 = vperm.xlu0 %1017, %v1005
      %v1019 = vpop.permute.xlu0 %1018
      %1020 = vset.pattern.permute.xlu0 0
      %1021 = vperm.xlu0 %1020, %v1006
      %v1022 = vpop.permute.xlu0 %1021
      %1023 = vset.pattern.permute.xlu0 0
      %1024 = vperm.xlu0 %1023, %v1007
      %v1025 = vpop.permute.xlu0 %1024
      %1026 = vset.pattern.permute.xlu0 0
      %1027 = vperm.xlu0 %1026, %v1008
      %v1028 = vpop.permute.xlu0 %1027
      %1029 = vset.pattern.permute.xlu0 0
      %1030 = vperm.xlu0 %1029, %v1009
      %v1031 = vpop.permute.xlu0 %1030
      %1032 = vset.pattern.permute.xlu0 0
      %1033 = vperm.xlu0 %1032, %v1010
      %v1034 = vpop.permute.xlu0 %1033
      %vm1035 = vcmp.eq.s32.totalorder %v1013, 1
      %vm1036 = vcmp.eq.s32.totalorder %v1016, 1
      %vm1037 = vcmp.eq.s32.totalorder %v1019, 1
      %vm1038 = vcmp.eq.s32.totalorder %v1022, 1
      %vm1039 = vcmp.eq.s32.totalorder %v1025, 1
      %vm1040 = vcmp.eq.s32.totalorder %v1028, 1
      %vm1041 = vcmp.eq.s32.totalorder %v1031, 1
      %vm1042 = vcmp.eq.s32.totalorder %v1034, 1
      %v1043 = vsel %vm1035, %v983, 0.0
      %v1044 = vsel %vm1036, %v984, 0.0
      %v1045 = vsel %vm1037, %v985, 0.0
      %v1046 = vsel %vm1038, %v986, 0.0
      %v1047 = vsel %vm1039, %v987, 0.0
      %v1048 = vsel %vm1040, %v988, 0.0
      %v1049 = vsel %vm1041, %v989, 0.0
      %v1050 = vsel %vm1042, %v990, 0.0
      %v1051 = vmax.f32 %v1043, %v1044
      %v1052 = vrot.slane %v1051, 4
      %v1053 = vmax.f32 %v1051, %v1052
      %v1054 = vrot.slane %v1053, 2
      %v1055 = vmax.f32 %v1053, %v1054
      %v1056 = vrot.slane %v1055, 1
      %v1057 = vmax.f32 %v1055, %v1056
      %v1058 = vmax.f32 %v1045, %v1046
      %v1059 = vrot.slane %v1058, 4
      %v1060 = vmax.f32 %v1058, %v1059
      %v1061 = vrot.slane %v1060, 2
      %v1062 = vmax.f32 %v1060, %v1061
      %v1063 = vrot.slane %v1062, 1
      %v1064 = vmax.f32 %v1062, %v1063
      %v1065 = vmax.f32 %v1047, %v1048
      %v1066 = vrot.slane %v1065, 4
      %v1067 = vmax.f32 %v1065, %v1066
      %v1068 = vrot.slane %v1067, 2
      %v1069 = vmax.f32 %v1067, %v1068
      %v1070 = vrot.slane %v1069, 1
      %v1071 = vmax.f32 %v1069, %v1070
      %v1072 = vmax.f32 %v1049, %v1050
      %v1073 = vrot.slane %v1072, 4
      %v1074 = vmax.f32 %v1072, %v1073
      %v1075 = vrot.slane %v1074, 2
      %v1076 = vmax.f32 %v1074, %v1075
      %v1077 = vrot.slane %v1076, 1
      %v1078 = vmax.f32 %v1076, %v1077
      %1079 = vst [vmem:[%s264] sm:$0x1] %v1057
      %1080 = vst [vmem:[%s264 + $0x8] sm:$0x1] %v1064
      %1081 = vst [vmem:[%s264 + $0x10] sm:$0x1] %v1071
      %1082 = vst [vmem:[%s264 + $0x18] sm:$0x1] %v1078
      %vm1083 = vcmp.eq.s32.totalorder %v283, 1
      %vm1084 = vcmp.eq.s32.totalorder %v284, 1
      %vm1085 = vcmp.eq.s32.totalorder %v285, 1
      %vm1086 = vcmp.eq.s32.totalorder %v286, 1
      %vm1087 = vcmp.eq.s32.totalorder %v287, 1
      %vm1088 = vcmp.eq.s32.totalorder %v288, 1
      %vm1089 = vcmp.eq.s32.totalorder %v289, 1
      %vm1090 = vcmp.eq.s32.totalorder %v290, 1
      %v1091 = vsel %vm1083, 1, 0
      %v1092 = vsel %vm1084, 1, 0
      %v1093 = vsel %vm1085, 1, 0
      %v1094 = vsel %vm1086, 1, 0
      %v1095 = vsel %vm1087, 1, 0
      %v1096 = vsel %vm1088, 1, 0
      %v1097 = vsel %vm1089, 1, 0
      %v1098 = vsel %vm1090, 1, 0
      %1099 = vset.pattern.permute.xlu0 0
      %1100 = vperm.xlu0 %1099, %v1091
      %v1101 = vpop.permute.xlu0 %1100
      %1102 = vset.pattern.permute.xlu0 0
      %1103 = vperm.xlu0 %1102, %v1092
      %v1104 = vpop.permute.xlu0 %1103
      %1105 = vset.pattern.permute.xlu0 0
      %1106 = vperm.xlu0 %1105, %v1093
      %v1107 = vpop.permute.xlu0 %1106
      %1108 = vset.pattern.permute.xlu0 0
      %1109 = vperm.xlu0 %1108, %v1094
      %v1110 = vpop.permute.xlu0 %1109
      %1111 = vset.pattern.permute.xlu0 0
      %1112 = vperm.xlu0 %1111, %v1095
      %v1113 = vpop.permute.xlu0 %1112
      %1114 = vset.pattern.permute.xlu0 0
      %1115 = vperm.xlu0 %1114, %v1096
      %v1116 = vpop.permute.xlu0 %1115
      %1117 = vset.pattern.permute.xlu0 0
      %1118 = vperm.xlu0 %1117, %v1097
      %v1119 = vpop.permute.xlu0 %1118
      %1120 = vset.pattern.permute.xlu0 0
      %1121 = vperm.xlu0 %1120, %v1098
      %v1122 = vpop.permute.xlu0 %1121
      %vm1123 = vcmp.eq.s32.totalorder %v1101, 1
      %vm1124 = vcmp.eq.s32.totalorder %v1104, 1
      %vm1125 = vcmp.eq.s32.totalorder %v1107, 1
      %vm1126 = vcmp.eq.s32.totalorder %v1110, 1
      %vm1127 = vcmp.eq.s32.totalorder %v1113, 1
      %vm1128 = vcmp.eq.s32.totalorder %v1116, 1
      %vm1129 = vcmp.eq.s32.totalorder %v1119, 1
      %vm1130 = vcmp.eq.s32.totalorder %v1122, 1
      %v1131 = vsel %vm1123, %v983, 0.0
      %v1132 = vsel %vm1124, %v984, 0.0
      %v1133 = vsel %vm1125, %v985, 0.0
      %v1134 = vsel %vm1126, %v986, 0.0
      %v1135 = vsel %vm1127, %v987, 0.0
      %v1136 = vsel %vm1128, %v988, 0.0
      %v1137 = vsel %vm1129, %v989, 0.0
      %v1138 = vsel %vm1130, %v990, 0.0
      %v1139 = vmax.f32 %v1131, %v1132
      %v1140 = vrot.slane %v1139, 4
      %v1141 = vmax.f32 %v1139, %v1140
      %v1142 = vrot.slane %v1141, 2
      %v1143 = vmax.f32 %v1141, %v1142
      %v1144 = vrot.slane %v1143, 1
      %v1145 = vmax.f32 %v1143, %v1144
      %v1146 = vmax.f32 %v1133, %v1134
      %v1147 = vrot.slane %v1146, 4
      %v1148 = vmax.f32 %v1146, %v1147
      %v1149 = vrot.slane %v1148, 2
      %v1150 = vmax.f32 %v1148, %v1149
      %v1151 = vrot.slane %v1150, 1
      %v1152 = vmax.f32 %v1150, %v1151
      %v1153 = vmax.f32 %v1135, %v1136
      %v1154 = vrot.slane %v1153, 4
      %v1155 = vmax.f32 %v1153, %v1154
      %v1156 = vrot.slane %v1155, 2
      %v1157 = vmax.f32 %v1155, %v1156
      %v1158 = vrot.slane %v1157, 1
      %v1159 = vmax.f32 %v1157, %v1158
      %v1160 = vmax.f32 %v1137, %v1138
      %v1161 = vrot.slane %v1160, 4
      %v1162 = vmax.f32 %v1160, %v1161
      %v1163 = vrot.slane %v1162, 2
      %v1164 = vmax.f32 %v1162, %v1163
      %v1165 = vrot.slane %v1164, 1
      %v1166 = vmax.f32 %v1164, %v1165
      %1167 = vst [vmem:[%s264 + $0x1] sm:$0x1] %v1145
      %1168 = vst [vmem:[%s264 + $0x9] sm:$0x1] %v1152
      %1169 = vst [vmem:[%s264 + $0x11] sm:$0x1] %v1159
      %1170 = vst [vmem:[%s264 + $0x19] sm:$0x1] %v1166
      %s1171 = smul.u32 4, %s16
      %p1172 = scmp.lt.s32.totalorder %s1171, 7
      %s1173 = scalar_select %p1172, %s1171, 7
      %s1174 = smul.addr %s1173, 8
      %s1175 = scalar_lea.vmem %s5, %s1174
      // Predicated region
      $region41: #{surrogate_encoder_forward.1} parent=39 // pred_check
        %p1176 = pneg %p154
      $region42: #{surrogate_encoder_forward.1} parent=39 // pred_check_branch
        %1178 = sbr.rel (%p1176) target = $region44
      $region43: #{surrogate_encoder_forward.1} parent=39 // pred_region
        %s1179 = smul.u32 4, %s16
      $region44: #{surrogate_encoder_forward.1} parent=39 // pred_fallthru
        _
    $region40: #{surrogate_encoder_forward.1} parent=5 // pred_fallthru
      _
    %p1180 = scmp.le.s32.totalorder 2, %s11
    // Predicated region
    $region45: #{surrogate_encoder_forward.1} parent=5 // pred_check
      %p1181 = pneg %p1180
    $region46: #{surrogate_encoder_forward.1} parent=5 // pred_check_branch
      %1183 = sbr.rel (%p1181) target = $region48
    $region47: #{surrogate_encoder_forward.1} parent=5 // pred_region
      %s1184 = ssub.s32 %s11, 2
      // Predicated region
      $region49: #{surrogate_encoder_forward.1} parent=47 // pred_check
        %p1185 = pneg %p160
      $region50: #{surrogate_encoder_forward.1} parent=47 // pred_check_branch
        %1187 = sbr.rel (%p1185) target = $region52
      $region51: #{surrogate_encoder_forward.1} parent=47 // pred_region
        %s1188 = smul.u32 4, %s17
        %p1189 = scmp.lt.s32.totalorder %s1188, 7
        %s1190 = scalar_select %p1189, %s1188, 7
        %s1191 = smul.addr %s1190, 8
        %s1192 = scalar_lea.vmem %s5, %s1191
      $region52: #{surrogate_encoder_forward.1} parent=47 // pred_fallthru
        _
    $region48: #{surrogate_encoder_forward.1} parent=5 // pred_fallthru
      _
  $region6: #{surrogate_encoder_forward.1} parent=0 // loop_footer
    %s15 = sadd.s32 1, %s11
  $region7: #{surrogate_encoder_forward.1} parent=0 // loop_footer_branch
    %10 = sbr.rel target = $region3
  $region8: #{surrogate_encoder_forward.1} parent=0 // loop_exit
    _

</llo_original>
